<compile_context>
chip_gen: v7x
topology: tpu7x:2x2x1
jax: 0.10.0
libtpu: 0.0.40
codegen_flags: <defaults>
</compile_context>

<pallas_src>
import functools

import jax
import jax.numpy as jnp
from jax.experimental import pallas as pl
from jax.experimental.pallas import tpu as pltpu


def _round_up(a, b):
    return ((a + b - 1) // b) * b


def _time2vec_kernel(x_ref, w_ref, b_ref, m_ref, o_ref):
    # x_ref: (TM, PD) input tile; w_ref: (PD, PD) bf16 block-diagonal fused weight;
    # b_ref / m_ref: (1, PD) f32 bias / linear-column mask; o_ref: (TM, PD).
    x_bf = x_ref[...].astype(jnp.bfloat16)              # bf16 operands -> fewer MXU passes
    y = jnp.dot(x_bf, w_ref[...], preferred_element_type=jnp.float32)
    y = y + b_ref[...]                                   # f32 bias, sublane broadcast
    # mask > 0 marks column 0 of each D-wide segment -> identity; elsewhere -> sin.
    o_ref[...] = jnp.where(m_ref[...] > 0.0, y, jnp.sin(y)).astype(o_ref.dtype)


def prepare_time2vec_params(w_lin, b_lin, w_per, b_per, *, pack):
    """Fuse the two Linear layers, build the lane-packed block-diagonal weight
    (bf16) and the precomputed linear-column mask.  Done ONCE at setup time.

    PyTorch Linear stores weight as (out, in), i.e. y = x @ W^T + b.
    """
    w_comb = jnp.concatenate([w_lin.T, w_per.T], axis=1)     # (D, D): col 0 linear, 1.. periodic
    b_comb = jnp.concatenate([b_lin, b_per], axis=0)          # (D,)
    D = w_comb.shape[0]
    eye_p = jnp.eye(pack, dtype=w_comb.dtype)
    w_packed = jnp.kron(eye_p, w_comb).astype(jnp.bfloat16)   # (pack*D, pack*D) block-diagonal
    b_packed = jnp.tile(b_comb, pack)[None, :].astype(jnp.float32)        # (1, pack*D)
    lin_mask = (jnp.arange(pack * D) % D == 0).astype(jnp.float32)[None, :]  # (1, pack*D)
    return w_packed, b_packed, lin_mask


def time2vec(x, w_packed, b_packed, lin_mask, *, input_dim, pack, tile_rows=4096):
    """x: (..., input_dim). Returns (..., input_dim) matching the PyTorch module."""
    D = input_dim
    PD = pack * D
    orig_shape = x.shape
    x2 = x.reshape(-1, D)
    M = x2.shape[0]

    # Single pad, only when lane packing needs it (M not a multiple of pack).
    m_pad = _round_up(M, pack)
    if m_pad != M:
        x2 = jnp.pad(x2, ((0, m_pad - M), (0, 0)))
    xp = x2.reshape(m_pad // pack, PD)
    Mp = xp.shape[0]

    # Row tile: big enough to amortize the ~0.35us per-grid-step overhead, but
    # guarantee >=2 grid steps when possible so the "parallel" axis can shard
    # across v7x's two TensorCores.  Multiple of 16 keeps bf16 I/O tiling legal.
    if Mp <= 16:
        tm = Mp                                       # single block == full extent
    else:
        tm = min(tile_rows, _round_up(pl.cdiv(Mp, 2), 16))

    # No grid padding: trailing partial tile reads are padded / writes dropped by
    # Pallas, so no extra full-array pad/slice HBM passes.
    grid = (pl.cdiv(Mp, tm),)

    itemsize = jnp.dtype(x.dtype).itemsize
    cost = pl.CostEstimate(
        flops=2 * Mp * PD * PD,
        transcendentals=Mp * PD,
        bytes_accessed=(2 * Mp * PD) * itemsize + PD * PD * 2 + 2 * PD * 4,
    )

    out_packed = pl.pallas_call(
        _time2vec_kernel,
        out_shape=jax.ShapeDtypeStruct((Mp, PD), x.dtype),
        grid=grid,
        in_specs=[
            pl.BlockSpec((tm, PD), lambda i: (i, 0)),   # x tile, pipelined over rows
            pl.BlockSpec((PD, PD), lambda i: (0, 0)),   # fused bf16 weight, resident
            pl.BlockSpec((1, PD), lambda i: (0, 0)),    # bias, resident
            pl.BlockSpec((1, PD), lambda i: (0, 0)),    # linear-column mask, resident
        ],
        out_specs=pl.BlockSpec((tm, PD), lambda i: (i, 0)),
        compiler_params=pltpu.CompilerParams(
            dimension_semantics=("parallel",),          # megacore / v7x 2nd TC
        ),
        cost_estimate=cost,
    )(xp, w_packed, b_packed, lin_mask)

    # Unpack: restore (..., D); slice only if padding actually happened.
    out = out_packed.reshape(m_pad, D)
    if m_pad != M:
        out = out[:M]
    return out.reshape(orig_shape)


if __name__ == "__main__":
    key = jax.random.PRNGKey(0)
    k_x, k_wl, k_bl, k_wp, k_bp = jax.random.split(key, 5)

    batch, seq, input_dim = 2, 8, 32
    x = jax.random.normal(k_x, (batch, seq, input_dim), dtype=jnp.float32)

    # Shapes match nn.Linear(input_dim, 1) and nn.Linear(input_dim, input_dim - 1);
    # PyTorch stores weight as (out, in).
    w_lin = jax.random.normal(k_wl, (1, input_dim), dtype=jnp.float32) * 0.1
    b_lin = jax.random.normal(k_bl, (1,), dtype=jnp.float32) * 0.1
    w_per = jax.random.normal(k_wp, (input_dim - 1, input_dim), dtype=jnp.float32) * 0.1
    b_per = jax.random.normal(k_bp, (input_dim - 1,), dtype=jnp.float32) * 0.1

    # Lane-dense packing factor: 4 logical rows per 128-lane vreg row for D=32.
    # (If 128 % input_dim != 0 we fall back to pack=1: correct but masked stores.)
    pack = 128 // input_dim if (input_dim <= 128 and 128 % input_dim == 0) else 1

    # Hoisted parameter fusion / packing / mask build (once, not per forward call).
    w_packed, b_packed, lin_mask = prepare_time2vec_params(
        w_lin, b_lin, w_per, b_per, pack=pack)

    fwd = jax.jit(functools.partial(time2vec, input_dim=input_dim, pack=pack))
    out = jax.block_until_ready(fwd(x, w_packed, b_packed, lin_mask))

    # Reference check in plain JAX (same math as the PyTorch forward).
    lin_ref = x @ w_lin.T + b_lin
    per_ref = jnp.sin(x @ w_per.T + b_per)
    ref = jnp.concatenate([lin_ref, per_ref], axis=-1)
    assert out.shape == (batch, seq, input_dim)
    # bf16 matmul operands (f32 accumulation) -> looser tolerance than pure f32.
    err = float(jnp.max(jnp.abs(out - ref)))
    assert jnp.allclose(out, ref, atol=2e-2, rtol=2e-2), err

    print("KERNEL_OK")
</pallas_src>

<mosaic_0001>
module attributes {stable_mosaic.version = 11 : i64} {
  func.func @_time2vec_kernel(%arg0: i32, %arg1: memref<4x128xf32, #tpu.memory_space<vmem>>, %arg2: memref<128x128xbf16, #tpu.memory_space<vmem>>, %arg3: memref<1x128xf32, #tpu.memory_space<vmem>>, %arg4: memref<1x128xf32, #tpu.memory_space<vmem>>, %arg5: memref<4x128xf32, #tpu.memory_space<vmem>>) attributes {dimension_semantics = [#tpu.dimension_semantics<parallel>], iteration_bounds = array<i64: 1>, scalar_prefetch = 0 : i64, scratch_operands = 0 : i64, tpu.core_type = #tpu.core_type<tc>, window_params = [{transform_indices = @transform_0, window_bounds = array<i64: 4, 128>}, {pipeline_mode = #tpu.pipeline_mode<synchronous>, transform_indices = @transform_1, window_bounds = array<i64: 128, 128>}, {pipeline_mode = #tpu.pipeline_mode<synchronous>, transform_indices = @transform_2, window_bounds = array<i64: 1, 128>}, {pipeline_mode = #tpu.pipeline_mode<synchronous>, transform_indices = @transform_3, window_bounds = array<i64: 1, 128>}, {transform_indices = @transform_4, window_bounds = array<i64: 4, 128>}]} {
    %c0 = arith.constant 0 : index
    %c0_0 = arith.constant 0 : index
    %0 = vector.load %arg1[%c0, %c0_0] : memref<4x128xf32, #tpu.memory_space<vmem>>, vector<4x128xf32>
    %1 = arith.truncf %0 : vector<4x128xf32> to vector<4x128xbf16>
    %c0_1 = arith.constant 0 : index
    %c0_2 = arith.constant 0 : index
    %2 = vector.load %arg2[%c0_1, %c0_2] : memref<128x128xbf16, #tpu.memory_space<vmem>>, vector<128x128xbf16>
    %cst = arith.constant dense<0.000000e+00> : vector<4x128xf32>
    %3 = tpu.matmul %1, %2, %cst {dimension_numbers = #tpu.dot_dimension_numbers<[1], [0], [0], [1], [0, 0, 1, 1], [], []>} : vector<4x128xbf16>, vector<128x128xbf16>, vector<4x128xf32> -> vector<4x128xf32>
    %c0_3 = arith.constant 0 : index
    %c0_4 = arith.constant 0 : index
    %4 = vector.load %arg3[%c0_3, %c0_4] : memref<1x128xf32, #tpu.memory_space<vmem>>, vector<1x128xf32>
    %5 = vector.broadcast %4 : vector<1x128xf32> to vector<4x128xf32>
    %6 = arith.addf %3, %5 : vector<4x128xf32>
    %c0_5 = arith.constant 0 : index
    %c0_6 = arith.constant 0 : index
    %7 = vector.load %arg4[%c0_5, %c0_6] : memref<1x128xf32, #tpu.memory_space<vmem>>, vector<1x128xf32>
    %cst_7 = arith.constant 0.000000e+00 : f32
    %8 = vector.broadcast %cst_7 : f32 to vector<1x128xf32>
    %9 = arith.cmpf ogt, %7, %8 : vector<1x128xf32>
    %10 = math.sin %6 : vector<4x128xf32>
    %11 = vector.shape_cast %9 : vector<1x128xi1> to vector<1x128xi1>
    %12 = vector.broadcast %11 : vector<1x128xi1> to vector<4x128xi1>
    %13 = arith.select %12, %6, %10 : vector<4x128xi1>, vector<4x128xf32>
    %c0_8 = arith.constant 0 : index
    %c0_9 = arith.constant 0 : index
    %14 = vector.load %arg5[%c0_8, %c0_9] : memref<4x128xf32, #tpu.memory_space<vmem>>, vector<4x128xf32>
    tpu.vector_store %arg5[%c0_8, %c0_9], %13 {strides = array<i32>} : memref<4x128xf32, #tpu.memory_space<vmem>>, vector<4x128xf32>,
    return
  }
  func.func @transform_0(%arg0: i32) -> (i32, i32) {
    %c0_i32 = arith.constant 0 : i32
    %c0_i32_0 = arith.constant 0 : i32
    return %arg0, %c0_i32 : i32, i32
  }
  func.func @transform_1(%arg0: i32) -> (i32, i32) {
    %c0_i32 = arith.constant 0 : i32
    %c0_i32_0 = arith.constant 0 : i32
    %c0_i32_1 = arith.constant 0 : i32
    return %c0_i32, %c0_i32_0 : i32, i32
  }
  func.func @transform_2(%arg0: i32) -> (i32, i32) {
    %c0_i32 = arith.constant 0 : i32
    %c0_i32_0 = arith.constant 0 : i32
    %c0_i32_1 = arith.constant 0 : i32
    return %c0_i32, %c0_i32_0 : i32, i32
  }
  func.func @transform_3(%arg0: i32) -> (i32, i32) {
    %c0_i32 = arith.constant 0 : i32
    %c0_i32_0 = arith.constant 0 : i32
    %c0_i32_1 = arith.constant 0 : i32
    return %c0_i32, %c0_i32_0 : i32, i32
  }
  func.func @transform_4(%arg0: i32) -> (i32, i32) {
    %c0_i32 = arith.constant 0 : i32
    %c0_i32_0 = arith.constant 0 : i32
    return %arg0, %c0_i32 : i32, i32
  }
}

</mosaic_0001>

<llo_original>
// kernel: time2vec.1
$region0: #{time2vec.1}
  #allocation0 [shape = 'u32[]', space=smem, size = 0x4, offset = 0x4, fixed_abs, tag = 'smem constant byte address 0x4 - core index']
  #allocation1 [shape = 'u32[144,128]{1,0:T(1,128)}', space=vmem, size = 0x12000, scoped, tag = 'internal scratch']
  %s0 = inlined_call_operand.vmem [shape: f32[4,128], index: 0, kind: input, shape index: {}]
  %s1 = inlined_call_operand.hbm [shape: bf16[128,128], index: 1, kind: input, shape index: {}]
  %s2 = inlined_call_operand.vmem [shape: f32[1,128], index: 2, kind: input, shape index: {}]
  %s3 = inlined_call_operand.vmem [shape: f32[1,128], index: 3, kind: input, shape index: {}]
  %s4 = inlined_call_operand.vmem [shape: f32[4,128], index: 4, kind: output, shape index: {}]
  %s5 = sld [smem:[#allocation0]]
  $region30: #{time2vec.1} parent=0
    _
  %s7 = ssub.s32 1, %s5
  %s8 = scalar_select 0, %s7, %s5
  $region1: #{time2vec.1} parent=0
    #allocation2 [shape = 'u8[32768]{0}', space=vmem, size = 0x8000, scoped, tag = 'input window, operand 1, single buffered']
    #allocation3 [shape = 's32[1]{0}', space=sflag, size = 0x4, scoped, tag = 'scoped memory for time2vec.1']
    %9 = vsyncpa [#allocation3], 0
    // Predicated region
    $region2: #{time2vec.1} parent=1 // pred_check
      _
    $region3: #{time2vec.1} parent=1 // pred_check_branch
      %11 = sbr.rel (0) target = $region5
    $region4: #{time2vec.1} parent=1 // pred_region
      _
    $region5: #{time2vec.1} parent=1 // pred_fallthru
      _
    // Predicated region
    $region6: #{time2vec.1} parent=1 // pred_check
      _
    $region7: #{time2vec.1} parent=1 // pred_check_branch
      %13 = sbr.rel (0) target = $region9
    $region8: #{time2vec.1} parent=1 // pred_region
      %s15 = ssub.s32 1024, 1024
      %16 = vsyncadd [#allocation3], %s15
      %s17 = sshll.u32 [#allocation2], 4
      %s18 = int_to_ptr.vmem [resolvable:$true] %s17
      %23 = dma.hbm_to_vmem [thread:$0]  %s1, 1024, %s18, [#allocation3], 64, 64, 4
    $region9: #{time2vec.1} parent=1 // pred_fallthru
      _
    // Predicated region
    $region10: #{time2vec.1} parent=1 // pred_check
      _
    $region11: #{time2vec.1} parent=1 // pred_check_branch
      %25 = sbr.rel (0) target = $region13
    $region12: #{time2vec.1} parent=1 // pred_region
      _
    $region13: #{time2vec.1} parent=1 // pred_fallthru
      _
    // Predicated region
    $region14: #{time2vec.1} parent=1 // pred_check
      _
    $region15: #{time2vec.1} parent=1 // pred_check_branch
      %27 = sbr.rel (0) target = $region17
    $region16: #{time2vec.1} parent=1 // pred_region
      _
    $region17: #{time2vec.1} parent=1 // pred_fallthru
      _
    // Predicated region
    $region18: #{time2vec.1} parent=1 // pred_check
      _
    $region19: #{time2vec.1} parent=1 // pred_check_branch
      %29 = sbr.rel (0) target = $region21
    $region20: #{time2vec.1} parent=1 // pred_region
      %30 = dma.done [#allocation3], 1024
    $region21: #{time2vec.1} parent=1 // pred_fallthru
      _
    %v32 = vld [vmem:[%s0] sm:$0xf]
    %v33 = vpack.c.bf16 %v32, %v32
    %v34 = vld [vmem:[#allocation2] sm:$0xf]
    %v35 = vld [vmem:[#allocation2 + $0x4] sm:$0xf]
    %v36 = vld [vmem:[#allocation2 + $0x8] sm:$0xf]
    %v37 = vld [vmem:[#allocation2 + $0xc] sm:$0xf]
    %v38 = vld [vmem:[#allocation2 + $0x10] sm:$0xf]
    %v39 = vld [vmem:[#allocation2 + $0x14] sm:$0xf]
    %v40 = vld [vmem:[#allocation2 + $0x18] sm:$0xf]
    %v41 = vld [vmem:[#allocation2 + $0x1c] sm:$0xf]
    %v42 = vld [vmem:[#allocation2 + $0x20] sm:$0xf]
    %v43 = vld [vmem:[#allocation2 + $0x24] sm:$0xf]
    %v44 = vld [vmem:[#allocation2 + $0x28] sm:$0xf]
    %v45 = vld [vmem:[#allocation2 + $0x2c] sm:$0xf]
    %v46 = vld [vmem:[#allocation2 + $0x30] sm:$0xf]
    %v47 = vld [vmem:[#allocation2 + $0x34] sm:$0xf]
    %v48 = vld [vmem:[#allocation2 + $0x38] sm:$0xf]
    %v49 = vld [vmem:[#allocation2 + $0x3c] sm:$0xf]
    %v50 = vld [vmem:[%s2] sm:$0x1]
    %v52 = vlaneseq
    %v53 = vshrl.u32 %v52, 7
    %v54 = vsub.s32 0, %v53
    %v55 = vrot.slane %v50, %v54
    %v73 = vunpack.c.l.b16 %v34
    %v74 = vunpack.c.l.b16 %v35
    %v75 = vunpack.c.l.b16 %v36
    %v76 = vunpack.c.l.b16 %v37
    %v77 = vunpack.c.l.b16 %v38
    %v78 = vunpack.c.l.b16 %v39
    %v79 = vunpack.c.l.b16 %v40
    %v80 = vunpack.c.l.b16 %v41
    %v81 = vunpack.c.l.b16 %v42
    %v82 = vunpack.c.l.b16 %v43
    %v83 = vunpack.c.l.b16 %v44
    %v84 = vunpack.c.l.b16 %v45
    %v85 = vunpack.c.l.b16 %v46
    %v86 = vunpack.c.l.b16 %v47
    %v87 = vunpack.c.l.b16 %v48
    %v88 = vunpack.c.l.b16 %v49
    %v89 = vpack.c.b16 %v74, %v73
    %v90 = vpack.c.b16 %v76, %v75
    %v91 = vpack.c.b16 %v78, %v77
    %v92 = vpack.c.b16 %v80, %v79
    %v93 = vpack.c.b16 %v82, %v81
    %v94 = vpack.c.b16 %v84, %v83
    %v95 = vpack.c.b16 %v86, %v85
    %v96 = vpack.c.b16 %v88, %v87
    %105 = vmatprep.subr.bf16.mxu0 0
    %106 = vmatpush1.bf16.msra.mxu0 %v89
    %107 = vmatprep.subr.bf16.mxu0 0
    %108 = vmatpush1.bf16.msra.mxu0 %v90
    %109 = vmatprep.subr.bf16.mxu0 0
    %110 = vmatpush1.bf16.msra.mxu0 %v91
    %111 = vmatprep.subr.bf16.mxu0 0
    %112 = vmatpush1.bf16.msra.mxu0 %v92
    %113 = vmatprep.subr.bf16.mxu0 0
    %114 = vmatpush1.bf16.msra.mxu0 %v93
    %115 = vmatprep.subr.bf16.mxu0 0
    %116 = vmatpush1.bf16.msra.mxu0 %v94
    %117 = vmatprep.subr.bf16.mxu0 0
    %118 = vmatpush1.bf16.msra.mxu0 %v95
    %119 = vmatprep.subr.bf16.mxu0 0
    %120 = vmatpush1.bf16.msra.mxu0 %v96
    %121 = vmatprep.subr.bf16.mxu0 0
    %122 = vmatpush1.bf16.msra.mxu0 0
    %123 = vmatprep.subr.bf16.mxu0 0
    %124 = vmatpush1.bf16.msra.mxu0 0
    %125 = vmatprep.subr.bf16.mxu0 0
    %126 = vmatpush1.bf16.msra.mxu0 0
    %127 = vmatprep.subr.bf16.mxu0 0
    %128 = vmatpush1.bf16.msra.mxu0 0
    %129 = vmatprep.subr.bf16.mxu0 0
    %130 = vmatpush1.bf16.msra.mxu0 0
    %131 = vmatprep.subr.bf16.mxu0 0
    %132 = vmatpush1.bf16.msra.mxu0 0
    %133 = vmatprep.subr.bf16.mxu0 0
    %134 = vmatpush1.bf16.msra.mxu0 0
    %135 = vmatprep.subr.bf16.mxu0 0
    %136 = vmatpush1.bf16.msra.mxu0 0
    %137 = vmatprep.mubr.bf16.mxu0 0
    %138 = vmatmul.mubr.bf16.gmra.mrb[0].mxu0 %v33
    %v139 = vpop.f32.mrb[0].mxu0
    %v140 = vadd.f32 %v55, %v139
    %v141 = vpop.f32.mrb[0].mxu0
    %v142 = vpop.f32.mrb[0].mxu0
    %v143 = vpop.f32.mrb[0].mxu0
    %144 = vdwg.mxu0
    %v145 = vld [vmem:[%s3] sm:$0x1]
    %vm146 = vcmp.gt.f32.partialorder %v145, 0.0
    %v147 = vand.u32 2147483647, %v140
    %vm148 = vcmp.le.f32.partialorder %v147, 0.7853982
    %vm149 = vcmp.lt.s32.totalorder %v140, 0
    %v150 = vand.u32 %v140, 2139095040
    %v151 = vshrl.u32 %v150, 23
    %v152 = vsub.s32 %v151, 127
    %v153 = vand.u32 2147483647, %v140
    %v154 = vand.u32 %v153, 8388607
    %v155 = vor.u32 %v154, 8388608
    %v156 = vsub.s32 0, %v155
    %v157 = vadd.s32 %v152, 1
    %vm158 = vcmp.gt.s32.totalorder %v157, 0
    %v159 = vsel %vm158, %v157, 0
    %v160 = vshrl.u32 %v159, 5
    %v161 = vand.u32 %v159, 31
    %v162 = vsub.s32 32, %v161
    %v163 = vshrl.u32 683565275, %v162
    %v164 = vshll.u32 683565275, %v161
    %v165 = vshrl.u32 2475754826, %v162
    %v166 = vor.u32 %v164, %v165
    %v167 = vshll.u32 2475754826, %v161
    %v168 = vshrl.u32 2131351028, %v162
    %v169 = vor.u32 %v167, %v168
    %v170 = vshll.u32 2131351028, %v161
    %v171 = vshrl.u32 2102212464, %v162
    %v172 = vor.u32 %v170, %v171
    %v173 = vshll.u32 2102212464, %v161
    %v174 = vshrl.u32 920167782, %v162
    %v175 = vor.u32 %v173, %v174
    %v176 = vshll.u32 920167782, %v161
    %v177 = vshrl.u32 1326507024, %v162
    %v178 = vor.u32 %v176, %v177
    %vm179 = vcmp.lt.s32.totalorder %v160, 1
    %vm180 = vcmp.lt.s32.totalorder %v160, 2
    %vm181 = vcmp.lt.s32.totalorder %v160, 3
    %vm182 = vcmp.lt.s32.totalorder %v160, 4
    %v183 = vsel %vm179, %v163, %v166
    %v184 = vsel %vm182, %v172, 2102212464
    %v185 = vsel %vm181, %v169, %v184
    %v186 = vsel %vm180, %v183, %v185
    %v187 = vsel %vm179, %v166, %v169
    %v188 = vsel %vm182, %v175, 920167782
    %v189 = vsel %vm181, %v172, %v188
    %v190 = vsel %vm180, %v187, %v189
    %v191 = vsel %vm179, %v169, %v172
    %v192 = vsel %vm182, %v178, 1326507024
    %v193 = vsel %vm181, %v175, %v192
    %v194 = vsel %vm180, %v191, %v193
    %v195 = vshll.u32 %v155, 8
    %v196 = vmul.u32.u64.compose %v195, %v194
    %v197 = vextract.low.u32 %v196
    %v198 = vextract.high.u32 %v196
    %v199 = vmul.u32.u64.compose %v195, %v190
    %v200 = vextract.low.u32 %v199
    %v201 = vextract.high.u32 %v199
    %v202 = vmul.u32 %v195, %v186
    %v203 = vadd.s32 %v198, %v200
    %vm204 = vc.u32 %v198, %v200
    %v205 = vadd.s32 %v201, 1
    %v206 = vsel %vm204, %v205, %v201
    %v207 = vadd.s32 %v202, %v206
    %v208 = vadd.s32 %v207, 536870912
    %v209 = vshrl.u32 %v208, 30
    %v210 = vshll.u32 %v209, 30
    %v211 = vsub.s32 %v207, %v210
    %vm212 = vcmp.lt.s32.totalorder %v211, 0
    %v213 = vsub.s32 0, %v211
    %v214 = vsel %vm212, %v213, %v211
    %v215 = vclz %v214
    %v216 = vsub.s32 %v215, 2
    %vm217 = vcmp.gt.s32.totalorder 0, %v216
    %v218 = vsel %vm217, 0, %v216
    %v219 = vsub.s32 32, %v218
    %v220 = vshll.u32 %v211, %v218
    %v221 = vshrl.u32 %v203, %v219
    %v222 = vor.u32 %v220, %v221
    %v223 = vsub.s32 4294967266, %v218
    %v224 = vadd.s32 %v223, 127
    %v225 = vshll.u32 %v224, 23
    %v226 = vor.u32 4788187, %v225
    %v227 = vand.u32 2147483647, %v226
    %v229 = vcvt.s32.f32 %v222
    %v230 = vmul.f32 %v229, %v227
    %v231 = vxor.u32 %v230, 2147483648
    %v232 = vsel %vm149, %v231, %v230
    %v233 = vsub.s32 4, %v209
    %v234 = vsel %vm149, %v233, %v209
    %v235 = vsel %vm148, %v140, %v232
    %v236 = vsel %vm148, 0, %v234
    %v237 = vcosq.f32.pop %v235
    %v238 = vsinq.f32.pop %v235
    %vm239 = vweird.f32 %v140
    %v240 = vadd.s32 %v236, 3
    %v241 = vand.u32 %v240, 3
    %vm242 = vcmp.lt.s32.totalorder %v241, 2
    %vm243 = vcmp.eq.s32.totalorder %v241, 0
    %v244 = vxor.u32 %v238, 2147483648
    %v245 = vsel %vm243, %v237, %v244
    %vm246 = vcmp.eq.s32.totalorder %v241, 2
    %v247 = vxor.u32 %v237, 2147483648
    %v248 = vsel %vm246, %v247, %v238
    %v249 = vsel %vm242, %v245, %v248
    %v250 = vsel %vm239, nan, %v249
    %v251 = vsel %vm146, 1, 0
    %v252 = vlaneseq
    %v253 = vshrl.u32 %v252, 7
    %v254 = vsub.s32 0, %v253
    %v255 = vrot.slane %v251, %v254
    %vm256 = vcmp.eq.s32.totalorder %v255, 1
    %v257 = vsel %vm256, %v140, %v250
    %258 = vst [vmem:[%s4] sm:$0xf] %v257
    // Predicated region
    $region22: #{time2vec.1} parent=1 // pred_check
      _
    $region23: #{time2vec.1} parent=1 // pred_check_branch
      %260 = sbr.rel (0) target = $region25
    $region24: #{time2vec.1} parent=1 // pred_region
      _
    $region25: #{time2vec.1} parent=1 // pred_fallthru
      _
    // Predicated region
    $region26: #{time2vec.1} parent=1 // pred_check
      _
    $region27: #{time2vec.1} parent=1 // pred_check_branch
      %262 = sbr.rel (0) target = $region29
    $region28: #{time2vec.1} parent=1 // pred_region
      _
    $region29: #{time2vec.1} parent=1 // pred_fallthru
      _
    %263 = vsyncpa [#allocation3], 1

</llo_original>
